<compile_context>
chip_gen: v7x
topology: tpu7x:2x2x1
jax: 0.10.0
libtpu: 0.0.40
codegen_flags: <defaults>
</compile_context>

<pallas_src>
import math

import jax
import jax.numpy as jnp
from jax.experimental import pallas as pl
from jax.experimental.pallas import tpu as pltpu

_DEFAULT_TILE_BYTES = 2 << 20          # ~2 MiB per stream per pipeline buffer
_COL_CANDIDATES = (512, 1024, 2048, 4096, 256, 128)   # lane-dense, multiple of 128
_FALLBACK_COLS = 512
_VMEM_LIMIT_BYTES = 32 << 20           # safe on v5e/v6e (128 MiB) and v7x (64 MiB)


def _cdiv(a, b):
    return -(-a // b)


def _round_down(x, m):
    return (x // m) * m


def _make_kernel(rows, block_rows, weighted, mask_rows):
    """Kernel factory closing over static tiling parameters."""

    def kernel(*refs):
        if weighted:
            x_ref, t_ref, w_ref, out_ref = refs
        else:
            x_ref, t_ref, out_ref = refs

        x = x_ref[...].astype(jnp.float32)
        t = t_ref[...].astype(jnp.float32)
        # torch.nn.BCELoss clamps each log at -100.  (log1p(-x) would be a hair
        # more accurate near x->1 but deviates from torch's literal log(1-x).)
        log_x = jnp.maximum(jnp.log(x), -100.0)
        log_1mx = jnp.maximum(jnp.log(1.0 - x), -100.0)
        # -(t*log_x + (1-t)*log_1mx), factored to save one multiply.
        loss = -(log_1mx + t * (log_x - log_1mx))
        if weighted:
            loss = loss * w_ref[...].astype(jnp.float32)

        if mask_rows:
            # Trailing partial block: rows beyond the array hold unspecified
            # data, so zero them before the reduce.  Pure VPU work on a unit
            # with plenty of slack in this memory-bound kernel.
            limit = rows - pl.program_id(0) * block_rows
            row_ids = jax.lax.broadcasted_iota(jnp.int32, loss.shape, 0)
            loss = jnp.where(row_ids < limit, loss, 0.0)

        out_ref[...] = jnp.sum(loss, axis=0, keepdims=True)[None]

    return kernel


def weighted_cross_entropy_loss(inp, target, weight_map=None, *,
                                max_tile_bytes=_DEFAULT_TILE_BYTES):
    assert inp.shape == target.shape
    if weight_map is not None:
        assert weight_map.shape == inp.shape
    n = math.prod(inp.shape)
    operands = [inp, target] + ([] if weight_map is None else [weight_map])

    # Pick a lane-dense column count that divides n, so the 2D view is a free
    # contiguous reshape (no HBM copy).  Fallback (n not a multiple of 128):
    # pad the flat array up to the next multiple of 512; zero-pad contributes
    # exactly zero loss.
    cols = next((c for c in _COL_CANDIDATES if n % c == 0), None)
    padded = cols is None
    if padded:
        cols = _FALLBACK_COLS   # TODO(synk): copies the operands once in HBM.
    rows = _cdiv(n, cols)

    # Dtype-aware tiling: sublane granularity 8/16/32 for 4/2/1-byte elements;
    # per-tile row budget sized from the widest operand so every stream stays
    # within max_tile_bytes per pipeline buffer.
    itemsizes = [jnp.dtype(a.dtype).itemsize for a in operands]
    sub_mult = max(32 // s for s in itemsizes)
    max_itemsize = max(itemsizes)
    max_tile_rows = max(
        sub_mult,
        _round_down(max_tile_bytes // (cols * max_itemsize), sub_mult))

    if rows <= max_tile_rows:
        block_rows = rows                   # single full-extent tile, no mask
    else:
        block_rows = max_tile_rows          # multiple of sublane granularity
    num_tiles = _cdiv(rows, block_rows)
    mask_rows = (rows % block_rows) != 0    # ragged trailing block -> in-kernel mask

    def to_2d(a):
        flat = a.reshape(-1)                # contiguous reshape: free
        pad = rows * cols - n
        if pad:
            flat = jnp.pad(flat, (0, pad))  # only on the rare non-128-multiple path
        return flat.reshape(rows, cols)

    operands = [to_2d(a) for a in operands]

    in_specs = [pl.BlockSpec((block_rows, cols), lambda i: (i, 0))
                for _ in operands]

    kernel = _make_kernel(rows, block_rows, weight_map is not None, mask_rows)

    out_bytes = num_tiles * cols * 4
    cost = pl.CostEstimate(
        flops=8 * n,
        transcendentals=2 * n,
        bytes_accessed=sum(a.size * jnp.dtype(a.dtype).itemsize
                           for a in operands) + out_bytes,
    )

    partials = pl.pallas_call(
        kernel,
        out_shape=jax.ShapeDtypeStruct((num_tiles, 1, cols), jnp.float32),
        grid_spec=pltpu.PrefetchScalarGridSpec(
            num_scalar_prefetch=0,
            grid=(num_tiles,),
            in_specs=in_specs,
            out_specs=pl.BlockSpec((1, 1, cols), lambda i: (i, 0, 0)),
        ),
        compiler_params=pltpu.CompilerParams(
            # Independent per-tile partial sums -> safe to shard across both
            # v7x TensorCores; harmless (single TC) on v5e/v6e.
            dimension_semantics=("parallel",),
            vmem_limit_bytes=_VMEM_LIMIT_BYTES,
        ),
        cost_estimate=cost,
    )(*operands)

    # Tiny final reduce + the single hoisted divide (== per-channel mean / C).
    return jnp.sum(partials) / jnp.float32(n)


def _reference(inp, target, weight_map=None):
    """Pure-JAX reference mirroring the PyTorch forward (per-channel loop)."""
    b = inp.shape[0]
    total = 0.0
    for ch in range(target.shape[1]):
        x = inp[:, ch].astype(jnp.float32)
        t = target[:, ch].astype(jnp.float32)
        log_x = jnp.maximum(jnp.log(x), -100.0)
        log_1mx = jnp.maximum(jnp.log(1.0 - x), -100.0)
        loss_ch = -(t * log_x + (1.0 - t) * log_1mx)
        loss_ch = loss_ch.reshape(b, -1)
        if weight_map is not None:
            loss_ch = loss_ch * weight_map[:, ch].reshape(b, -1).astype(jnp.float32)
        total = total + jnp.mean(loss_ch)
    return total / target.shape[1]


if __name__ == "__main__":
    key = jax.random.PRNGKey(0)
    k1, k2, k3 = jax.random.split(key, 3)

    B, C, H, W = 2, 4, 16, 16
    # input must be probabilities in (0, 1) for BCELoss.
    inp = jax.nn.sigmoid(jax.random.normal(k1, (B, C, H, W), dtype=jnp.float32))
    target = (jax.random.uniform(k2, (B, C, H, W)) > 0.5).astype(jnp.float32)
    weight_map = jax.random.uniform(k3, (B, C, H, W), dtype=jnp.float32) + 0.5

    # Case 1: no weight_map (dedicated 2-stream kernel, no dummy ones()).
    out1 = jax.block_until_ready(weighted_cross_entropy_loss(inp, target))
    ref1 = _reference(inp, target)
    assert jnp.allclose(out1, ref1, rtol=1e-5, atol=1e-5), (out1, ref1)

    # Case 2: with weight_map.
    out2 = jax.block_until_ready(
        weighted_cross_entropy_loss(inp, target, weight_map))
    ref2 = _reference(inp, target, weight_map)
    assert jnp.allclose(out2, ref2, rtol=1e-5, atol=1e-5), (out2, ref2)

    # Case 3: element count not a multiple of 128 (exercises the pad fallback).
    H3 = W3 = 15
    inp3 = jax.nn.sigmoid(jax.random.normal(k1, (B, C, H3, W3), dtype=jnp.float32))
    target3 = (jax.random.uniform(k2, (B, C, H3, W3)) > 0.5).astype(jnp.float32)
    wm3 = jax.random.uniform(k3, (B, C, H3, W3), dtype=jnp.float32) + 0.5
    out3 = jax.block_until_ready(weighted_cross_entropy_loss(inp3, target3, wm3))
    ref3 = _reference(inp3, target3, wm3)
    assert jnp.allclose(out3, ref3, rtol=1e-5, atol=1e-5), (out3, ref3)

    # Case 4: multi-tile, evenly divided grid (parallel axis, per-tile partial
    # outputs, wrapper reduce) via a shrunken per-tile byte budget.
    H4 = W4 = 64
    inp4 = jax.nn.sigmoid(jax.random.normal(k1, (B, C, H4, W4), dtype=jnp.float32))
    target4 = (jax.random.uniform(k2, (B, C, H4, W4)) > 0.5).astype(jnp.float32)
    wm4 = jax.random.uniform(k3, (B, C, H4, W4), dtype=jnp.float32) + 0.5
    out4 = jax.block_until_ready(
        weighted_cross_entropy_loss(inp4, target4, wm4,
                                    max_tile_bytes=8 * 512 * 4))
    ref4 = _reference(inp4, target4, wm4)
    assert jnp.allclose(out4, ref4, rtol=1e-4, atol=1e-5), (out4, ref4)

    # Case 5: ragged trailing block (rows % block_rows != 0) -> exercises the
    # in-kernel mask of the Pallas partial trailing block (no jnp.pad copy).
    H5, W5 = 32, 40                       # n = 10240, rows = 20, block_rows = 8
    inp5 = jax.nn.sigmoid(jax.random.normal(k1, (B, C, H5, W5), dtype=jnp.float32))
    target5 = (jax.random.uniform(k2, (B, C, H5, W5)) > 0.5).astype(jnp.float32)
    wm5 = jax.random.uniform(k3, (B, C, H5, W5), dtype=jnp.float32) + 0.5
    out5 = jax.block_until_ready(
        weighted_cross_entropy_loss(inp5, target5, wm5,
                                    max_tile_bytes=8 * 512 * 4))
    ref5 = _reference(inp5, target5, wm5)
    assert jnp.allclose(out5, ref5, rtol=1e-4, atol=1e-5), (out5, ref5)

    # Case 6: bf16 operands, multi-tile (exercises dtype-aware sublane tiling).
    inp6 = jax.nn.sigmoid(jax.random.normal(k1, (B, C, H4, W4))).astype(jnp.bfloat16)
    target6 = (jax.random.uniform(k2, (B, C, H4, W4)) > 0.5).astype(jnp.bfloat16)
    wm6 = (jax.random.uniform(k3, (B, C, H4, W4)) + 0.5).astype(jnp.bfloat16)
    out6 = jax.block_until_ready(
        weighted_cross_entropy_loss(inp6, target6, wm6,
                                    max_tile_bytes=16 * 512 * 2))
    ref6 = _reference(inp6, target6, wm6)
    assert jnp.allclose(out6, ref6, rtol=1e-3, atol=1e-4), (out6, ref6)

    print("KERNEL_OK")
</pallas_src>

<mosaic_0001>
module attributes {stable_mosaic.version = 11 : i64} {
  func.func @kernel(%arg0: i32, %arg1: memref<4x512xf32, #tpu.memory_space<vmem>>, %arg2: memref<4x512xf32, #tpu.memory_space<vmem>>, %arg3: memref<1x1x512xf32, #tpu.memory_space<vmem>>) attributes {dimension_semantics = [#tpu.dimension_semantics<parallel>], iteration_bounds = array<i64: 1>, scalar_prefetch = 0 : i64, scratch_operands = 0 : i64, tpu.core_type = #tpu.core_type<tc>, window_params = [{transform_indices = @transform_0, window_bounds = array<i64: 4, 512>}, {transform_indices = @transform_1, window_bounds = array<i64: 4, 512>}, {transform_indices = @transform_2, window_bounds = array<i64: 1, 1, 512>}]} {
    %c0 = arith.constant 0 : index
    %c0_0 = arith.constant 0 : index
    %0 = vector.load %arg1[%c0, %c0_0] : memref<4x512xf32, #tpu.memory_space<vmem>>, vector<4x512xf32>
    %c0_1 = arith.constant 0 : index
    %c0_2 = arith.constant 0 : index
    %1 = vector.load %arg2[%c0_1, %c0_2] : memref<4x512xf32, #tpu.memory_space<vmem>>, vector<4x512xf32>
    %2 = math.log %0 : vector<4x512xf32>
    %cst = arith.constant -1.000000e+02 : f32
    %3 = vector.broadcast %cst : f32 to vector<4x512xf32>
    %4 = arith.maximumf %2, %3 : vector<4x512xf32>
    %cst_3 = arith.constant 1.000000e+00 : f32
    %5 = vector.broadcast %cst_3 : f32 to vector<4x512xf32>
    %6 = arith.subf %5, %0 : vector<4x512xf32>
    %7 = math.log %6 : vector<4x512xf32>
    %cst_4 = arith.constant -1.000000e+02 : f32
    %8 = vector.broadcast %cst_4 : f32 to vector<4x512xf32>
    %9 = arith.maximumf %7, %8 : vector<4x512xf32>
    %10 = arith.subf %4, %9 : vector<4x512xf32>
    %11 = arith.mulf %1, %10 : vector<4x512xf32>
    %12 = arith.addf %9, %11 : vector<4x512xf32>
    %cst_5 = arith.constant 0.000000e+00 : f32
    %13 = vector.broadcast %cst_5 : f32 to vector<4x512xf32>
    %14 = arith.subf %13, %12 : vector<4x512xf32>
    %cst_6 = arith.constant dense<0.000000e+00> : vector<512xf32>
    %15 = vector.multi_reduction <add>, %14, %cst_6 [0] : vector<4x512xf32> to vector<512xf32>
    %16 = vector.shape_cast %15 : vector<512xf32> to vector<1x512xf32>
    %17 = vector.shape_cast %16 : vector<1x512xf32> to vector<1x1x512xf32>
    %c0_7 = arith.constant 0 : index
    %c0_8 = arith.constant 0 : index
    %c0_9 = arith.constant 0 : index
    %18 = vector.load %arg3[%c0_7, %c0_8, %c0_9] : memref<1x1x512xf32, #tpu.memory_space<vmem>>, vector<1x1x512xf32>
    tpu.vector_store %arg3[%c0_7, %c0_8, %c0_9], %17 {strides = array<i32>} : memref<1x1x512xf32, #tpu.memory_space<vmem>>, vector<1x1x512xf32>,
    return
  }
  func.func @transform_0(%arg0: i32) -> (i32, i32) {
    %c0_i32 = arith.constant 0 : i32
    %c0_i32_0 = arith.constant 0 : i32
    return %arg0, %c0_i32 : i32, i32
  }
  func.func @transform_1(%arg0: i32) -> (i32, i32) {
    %c0_i32 = arith.constant 0 : i32
    %c0_i32_0 = arith.constant 0 : i32
    return %arg0, %c0_i32 : i32, i32
  }
  func.func @transform_2(%arg0: i32) -> (i32, i32, i32) {
    %c0_i32 = arith.constant 0 : i32
    %c0_i32_0 = arith.constant 0 : i32
    %c0_i32_1 = arith.constant 0 : i32
    return %arg0, %c0_i32, %c0_i32_0 : i32, i32, i32
  }
}

</mosaic_0001>

<llo_original>
// kernel: tpu_custom_call.1
$region0: #{tpu_custom_call.1}
  #allocation0 [shape = 'u32[]', space=smem, size = 0x4, offset = 0x4, fixed_abs, tag = 'smem constant byte address 0x4 - core index']
  #allocation1 [shape = 'u32[144,128]{1,0:T(1,128)}', space=vmem, size = 0x12000, scoped, tag = 'internal scratch']
  %s0 = inlined_call_operand.hbm [shape: f32[4,512], index: 0, kind: input, shape index: {}]
  %s1 = inlined_call_operand.hbm [shape: f32[4,512], index: 1, kind: input, shape index: {}]
  %s2 = inlined_call_operand.hbm [shape: f32[1,1,512], index: 2, kind: output, shape index: {}]
  %s3 = sld [smem:[#allocation0]]
  $region26: #{tpu_custom_call.1} parent=0
    _
  %s5 = ssub.s32 1, %s3
  %s6 = scalar_select 0, %s5, %s3
  $region1: #{tpu_custom_call.1} parent=0
    #allocation2 [shape = 'u8[8192]{0}', space=vmem, size = 0x2000, scoped, tag = 'input window, operand 0, single buffered']
    #allocation3 [shape = 's32[1]{0}', space=sflag, size = 0x4, scoped, tag = 'scoped memory for tpu_custom_call.1']
    #allocation4 [shape = 's32[1]{0}', space=sflag, size = 0x4, scoped, tag = 'scoped memory for tpu_custom_call.1']
    #allocation5 [shape = 'u8[8192]{0}', space=vmem, size = 0x2000, scoped, tag = 'input window, operand 1, single buffered']
    #allocation6 [shape = 's32[1]{0}', space=sflag, size = 0x4, scoped, tag = 'scoped memory for tpu_custom_call.1']
    #allocation7 [shape = 'u8[2048]{0}', space=vmem, size = 0x800, scoped, tag = 'output window, operand 0, single buffered']
    %7 = vsyncpa [#allocation3], 0
    %8 = vsyncpa [#allocation6], 0
    %9 = vsyncpa [#allocation4], 0
    // Predicated region
    $region2: #{tpu_custom_call.1} parent=1 // pred_check
      _
    $region3: #{tpu_custom_call.1} parent=1 // pred_check_branch
      %11 = sbr.rel (0) target = $region5
    $region4: #{tpu_custom_call.1} parent=1 // pred_region
      %s13 = ssub.s32 256, 256
      %14 = vsyncadd [#allocation3], %s13
      %s16 = sshll.u32 [#allocation2], 4
      %s17 = int_to_ptr.vmem [resolvable:$true] %s16
      %19 = dma.hbm_to_vmem [thread:$0]  %s0, 256, %s17, [#allocation3]
    $region5: #{tpu_custom_call.1} parent=1 // pred_fallthru
      _
    // Predicated region
    $region6: #{tpu_custom_call.1} parent=1 // pred_check
      _
    $region7: #{tpu_custom_call.1} parent=1 // pred_check_branch
      %21 = sbr.rel (0) target = $region9
    $region8: #{tpu_custom_call.1} parent=1 // pred_region
      %s23 = ssub.s32 256, 256
      %24 = vsyncadd [#allocation6], %s23
      %s26 = sshll.u32 [#allocation5], 4
      %s27 = int_to_ptr.vmem [resolvable:$true] %s26
      %29 = dma.hbm_to_vmem [thread:$0]  %s1, 256, %s27, [#allocation6]
    $region9: #{tpu_custom_call.1} parent=1 // pred_fallthru
      _
    // Predicated region
    $region10: #{tpu_custom_call.1} parent=1 // pred_check
      _
    $region11: #{tpu_custom_call.1} parent=1 // pred_check_branch
      %31 = sbr.rel (0) target = $region13
    $region12: #{tpu_custom_call.1} parent=1 // pred_region
      %32 = dma.done [#allocation3], 256
    $region13: #{tpu_custom_call.1} parent=1 // pred_fallthru
      _
    // Predicated region
    $region14: #{tpu_custom_call.1} parent=1 // pred_check
      _
    $region15: #{tpu_custom_call.1} parent=1 // pred_check_branch
      %34 = sbr.rel (0) target = $region17
    $region16: #{tpu_custom_call.1} parent=1 // pred_region
      %35 = dma.done [#allocation6], 256
    $region17: #{tpu_custom_call.1} parent=1 // pred_fallthru
      _
    %v36 = vld [vmem:[#allocation2] sm:$0xff]
    %v37 = vld [vmem:[#allocation2 + $0x8] sm:$0xff]
    %v38 = vld [vmem:[#allocation5] sm:$0xff]
    %v39 = vld [vmem:[#allocation5 + $0x8] sm:$0xff]
    %v40 = vlog2.pop %v36
    %v41 = vmul.f32 %v40, 0.6931472
    %v42 = vlog2.pop %v37
    %v43 = vmul.f32 %v42, 0.6931472
    %v44 = vmax.f32 %v41, -100.0
    %v45 = vmax.f32 %v43, -100.0
    %v46 = vsub.f32 1.0, %v36
    %v47 = vsub.f32 1.0, %v37
    %v48 = vlog2.pop %v46
    %v49 = vmul.f32 %v48, 0.6931472
    %v50 = vlog2.pop %v47
    %v51 = vmul.f32 %v50, 0.6931472
    %v52 = vmax.f32 %v49, -100.0
    %v53 = vmax.f32 %v51, -100.0
    %v54 = vsub.f32 %v44, %v52
    %v55 = vsub.f32 %v45, %v53
    %v56 = vmul.f32 %v38, %v54
    %v57 = vmul.f32 %v39, %v55
    %v58 = vadd.f32 %v52, %v56
    %v59 = vadd.f32 %v53, %v57
    %v60 = vsub.f32 0.0, %v58
    %v61 = vsub.f32 0.0, %v59
    %v64 = vcombine.high %v60, %v60
    %v65 = vcombine.high %v61, %v61
    %vm68 = vcmask 1043456
    %v69 = vsel %vm68, %v60, 0.0
    %v70 = vrot.slane %v69, 4
    %v71 = vadd.f32 %v69, %v70
    %v72 = vrot.slane %v71, 2
    %v73 = vadd.f32 %v71, %v72
    %v74 = vrot.slane %v73, 1
    %v75 = vadd.f32 %v73, %v74
    %v76 = vsel %vm68, %v64, 0.0
    %v77 = vrot.slane %v76, 4
    %v78 = vadd.f32 %v76, %v77
    %v79 = vrot.slane %v78, 2
    %v80 = vadd.f32 %v78, %v79
    %v81 = vrot.slane %v80, 1
    %v82 = vadd.f32 %v80, %v81
    %v83 = vsel %vm68, %v61, 0.0
    %v84 = vrot.slane %v83, 4
    %v85 = vadd.f32 %v83, %v84
    %v86 = vrot.slane %v85, 2
    %v87 = vadd.f32 %v85, %v86
    %v88 = vrot.slane %v87, 1
    %v89 = vadd.f32 %v87, %v88
    %v90 = vsel %vm68, %v65, 0.0
    %v91 = vrot.slane %v90, 4
    %v92 = vadd.f32 %v90, %v91
    %v93 = vrot.slane %v92, 2
    %v94 = vadd.f32 %v92, %v93
    %v95 = vrot.slane %v94, 1
    %v96 = vadd.f32 %v94, %v95
    %v101 = vcombine.low %v75, %v82
    %v102 = vcombine.low %v89, %v96
    %v104 = vunpack.c.l.s4 1966171168
    %v105 = vunpack.c.0.s8 %v104
    %v106 = vlaneseq
    %v107 = vshrl.u32 %v106, 7
    %v108 = vsub.s32 %v105, %v107
    %v109 = vrot.slane %v101, %v108
    %v111 = vunpack.c.l.s4 1966171168
    %v112 = vunpack.c.0.s8 %v111
    %v113 = vlaneseq
    %v114 = vshrl.u32 %v113, 7
    %v115 = vsub.s32 %v112, %v114
    %v116 = vrot.slane %v102, %v115
    %v117 = vcombine.low %v109, %v116
    %v119 = vunpack.c.l.s4 1966171168
    %v120 = vunpack.c.0.s8 %v119
    %v121 = vlaneseq
    %v122 = vshrl.u32 %v121, 7
    %v123 = vsub.s32 %v120, %v122
    %v124 = vrot.slane %v117, %v123
    %v126 = vlaneseq
    %vm127 = vcmp.ge.s32.totalorder %v126, 0
    %vm128 = vcmp.lt.s32.totalorder %v126, 512
    %vm129 = vmand %vm127, %vm128
    %130 = vst.msk [vmem:[#allocation7] sm:$0xf] %vm129, %v124
    // Predicated region
    $region18: #{tpu_custom_call.1} parent=1 // pred_check
      _
    $region19: #{tpu_custom_call.1} parent=1 // pred_check_branch
      %132 = sbr.rel (0) target = $region21
    $region20: #{tpu_custom_call.1} parent=1 // pred_region
      %s134 = ssub.s32 64, 64
      %135 = vsyncadd [#allocation4], %s134
      %s137 = sshll.u32 [#allocation7], 4
      %s138 = int_to_ptr.vmem [resolvable:$true] %s137
      %140 = dma.vmem_to_hbm [thread:$0]  %s138, 64, %s2, [#allocation4]
    $region21: #{tpu_custom_call.1} parent=1 // pred_fallthru
      _
    // Predicated region
    $region22: #{tpu_custom_call.1} parent=1 // pred_check
      _
    $region23: #{tpu_custom_call.1} parent=1 // pred_check_branch
      %142 = sbr.rel (0) target = $region25
    $region24: #{tpu_custom_call.1} parent=1 // pred_region
      %143 = dma.done [#allocation4], 64
    $region25: #{tpu_custom_call.1} parent=1 // pred_fallthru
      _
    %144 = vsyncpa [#allocation3], 1
    %145 = vsyncpa [#allocation6], 1
    %146 = vsyncpa [#allocation4], 1

</llo_original>
